<compile_context>
chip_gen: v7x
topology: tpu7x:2x2x1
jax: 0.10.0
libtpu: 0.0.40
codegen_flags: <defaults>
</compile_context>

<pallas_src>
import functools

import jax
import jax.numpy as jnp
from jax.experimental import pallas as pl
from jax.experimental.pallas import tpu as pltpu


def _multi_scale_kernel(x_ref, o_ref, *, kernel_sizes, seq_len, max_len):
    """x_ref: (L, tn) lane-dense tile; o_ref: (max_len, tn)."""
    tn = o_ref.shape[1]
    f32_out = o_ref.dtype == jnp.float32

    off = 0          # running row offset in the output block (static)
    prev_k = None    # kernel size of the last fully-stored scale (reuse base)
    prev_off = 0     # its row offset in o_ref

    for k in kernel_sizes:
        out_len = seq_len // k
        if out_len == 0:
            # Scale produces no rows (kernel longer than the sequence); the
            # reference concat simply skips it.
            continue
        if off >= max_len:
            # Everything from here on is truncated away.
            break
        n_rows = min(out_len, max_len - off)  # per-scale truncation

        if k == 1:
            # Identity scale: dtype-preserving copy straight into the output
            # rows (no f32 round trip, no casts).
            blk = x_ref[0:n_rows, :]
            if blk.dtype != o_ref.dtype:
                blk = blk.astype(o_ref.dtype)
            o_ref[off:off + n_rows, :] = blk
        else:
            if (prev_k is not None and prev_k > 1 and k > prev_k
                    and k % prev_k == 0 and f32_out):
                # Derive this scale from the previous scale's means that were
                # just stored in o_ref: mean_k[i] = mean of `ratio` consecutive
                # mean_{prev_k} rows.  Reads n_rows*ratio rows instead of
                # n_rows*k rows of x_ref (cuts VMEM vld traffic).
                ratio = k // prev_k
                acc = o_ref[pl.ds(prev_off, n_rows, stride=ratio), :].astype(jnp.float32)
                for j in range(1, ratio):
                    acc = acc + o_ref[
                        pl.ds(prev_off + j, n_rows, stride=ratio), :].astype(jnp.float32)
                mean = acc * (1.0 / ratio)
            else:
                # Windowed mean via k sublane-strided loads summed on the VPU.
                acc = x_ref[pl.ds(0, n_rows, stride=k), :].astype(jnp.float32)
                for j in range(1, k):
                    acc = acc + x_ref[pl.ds(j, n_rows, stride=k), :].astype(jnp.float32)
                mean = acc * (1.0 / k)
            o_ref[off:off + n_rows, :] = mean.astype(o_ref.dtype)

        if n_rows == out_len:          # only untruncated scales can seed reuse
            prev_k, prev_off = k, off
        off += n_rows

    if off < max_len:
        # Zero-pad tail in one store (covers the whole remaining block).
        o_ref[off:max_len, :] = jnp.zeros((max_len - off, tn), o_ref.dtype)


def _tpu_info():
    """(physical VMEM bytes, TensorCores per chip); conservative fallbacks."""
    vmem = 64 * 1024 * 1024   # v7x physical VMEM (smallest of the three gens)
    cores = 1
    try:
        info = pltpu.get_tpu_info()
        v = getattr(info, "vmem_capacity_bytes", None)
        if v:
            vmem = int(v)
        for name in ("num_cores", "core_count", "num_tensorcores", "tensor_core_count"):
            c = getattr(info, name, None)
            if c:
                cores = int(c)
                break
    except Exception:
        pass
    return vmem, cores


def _pick_lane_tile(n_lanes, seq_len, max_len, itemsize, vmem_bytes, cores):
    """Lane-tile width: a multiple of 128 dividing n_lanes (or the full axis),
    keeping double-buffered in+out blocks well inside scoped VMEM and
    preferring >= 2 (even) grid steps so both v7x TensorCores get work."""
    bpe = max(int(itemsize), 1)

    def block_bytes(tn):
        # double-buffered input (L, tn) + output (max_len, tn) blocks
        return 2 * (seq_len + max_len) * tn * bpe

    if n_lanes % 128 != 0:
        return n_lanes                      # small / unpadded axis: one full block

    budget = (vmem_bytes * 3) // 8          # headroom for internal scratch/spills
    tn = 128
    while (tn * 2 <= 2048
           and n_lanes % (tn * 2) == 0
           and n_lanes // (tn * 2) >= 2     # keep >= 2 grid steps when possible
           and block_bytes(tn * 2) <= budget):
        tn *= 2

    # Prefer an even number of grid steps when 2 TensorCores share the chip.
    grid_n = n_lanes // tn
    if cores >= 2 and grid_n > 1 and grid_n % 2 == 1 and tn >= 256:
        tn //= 2
    return tn


def multi_scale_data(x, kernel_sizes, return_len):
    """JAX/Pallas equivalent of CrossGNN's multi_scale_data.

    x: (B, L, C) float array.  Returns (B, return_len, C) in x.dtype.
    """
    B, L, C = x.shape
    N = B * C
    kernel_sizes = tuple(int(k) for k in kernel_sizes)
    return_len = int(return_len)

    # Lane-dense slab: time on the sublane axis, batch*vars on the lane axis.
    x2 = jnp.transpose(x, (1, 0, 2)).reshape(L, N)

    # If the lane axis is large but not 128-aligned, pad it so it can be tiled
    # (keeps VMEM blocks bounded); small N stays as a single full-width block.
    pad_n = 0
    if N % 128 != 0 and N > 128:
        pad_n = (-N) % 128
        x2 = jnp.pad(x2, ((0, 0), (0, pad_n)))
    Np = N + pad_n

    vmem_bytes, cores = _tpu_info()
    bpe = x.dtype.itemsize
    tn = _pick_lane_tile(Np, L, return_len, bpe, vmem_bytes, cores)
    grid_n = Np // tn

    # Scoped-VMEM limit: what our blocks need (+ headroom), capped under physical.
    needed = 2 * (L + return_len) * tn * bpe
    vmem_limit = int(min(max(needed + (8 << 20), 32 << 20), vmem_bytes - (4 << 20)))
    # TODO(synk): if `needed` itself exceeds physical VMEM (extremely long L,
    # ~30k+ f32 rows at tn=128), an L-chunked pipeline over pooled-output row
    # chunks would be required; CrossGNN sequence lengths are far below that.

    flops = sum((k - 1) * (L // k) for k in kernel_sizes if L // k > 0) * N
    cost = pl.CostEstimate(
        flops=int(max(flops, 1)),
        transcendentals=0,
        bytes_accessed=int((L + return_len) * N * bpe),
    )

    kernel = functools.partial(
        _multi_scale_kernel,
        kernel_sizes=kernel_sizes,
        seq_len=L,
        max_len=return_len,
    )
    out2 = pl.pallas_call(
        kernel,
        out_shape=jax.ShapeDtypeStruct((return_len, Np), x.dtype),
        grid=(grid_n,),
        in_specs=[pl.BlockSpec((L, tn), lambda n: (0, n))],
        out_specs=pl.BlockSpec((return_len, tn), lambda n: (0, n)),
        compiler_params=pltpu.CompilerParams(
            dimension_semantics=("parallel",),
            vmem_limit_bytes=vmem_limit,
        ),
        cost_estimate=cost,
    )(x2)

    if pad_n:
        out2 = out2[:, :N]
    return jnp.transpose(out2.reshape(return_len, B, C), (1, 0, 2))


def _reference_multi_scale_data(x, kernel_sizes, return_len):
    """Plain-JAX reference mirroring the PyTorch semantics."""
    B, L, C = x.shape
    scales = []
    for k in kernel_sizes:
        out_len = L // k
        if out_len == 0:
            continue
        seg = x[:, : out_len * k, :].reshape(B, out_len, k, C)
        scales.append(seg.mean(axis=2))
    multi = jnp.concatenate(scales, axis=1) if scales else jnp.zeros((B, 0, C), x.dtype)
    cur = multi.shape[1]
    if cur < return_len:
        pad = jnp.zeros((B, return_len - cur, C), dtype=x.dtype)
        multi = jnp.concatenate([multi, pad], axis=1)
    elif cur > return_len:
        multi = multi[:, :return_len, :]
    return multi


if __name__ == "__main__":
    kernel_sizes = (1, 2, 4)
    key = jax.random.PRNGKey(0)

    # Case 1: small shapes, zero-padding branch (16 + 8 + 4 = 28 < 32),
    # single full-width lane tile, nested-scale reuse for k=4.
    B, L, C, return_len = 2, 16, 4, 32
    x = jax.random.normal(key, (B, L, C), dtype=jnp.float32)
    out = jax.block_until_ready(multi_scale_data(x, kernel_sizes, return_len))
    ref = _reference_multi_scale_data(x, kernel_sizes, return_len)
    assert out.shape == (B, return_len, C), out.shape
    assert jnp.allclose(out, ref, atol=1e-5, rtol=1e-5), "case1 mismatch vs reference"

    # Case 2: truncation branch (16 + 8 = 24 > 20; scale-2 partially kept).
    out = jax.block_until_ready(multi_scale_data(x, kernel_sizes, 20))
    ref = _reference_multi_scale_data(x, kernel_sizes, 20)
    assert out.shape == (B, 20, C), out.shape
    assert jnp.allclose(out, ref, atol=1e-5, rtol=1e-5), "case2 mismatch vs reference"

    # Case 3: multi-tile lane axis (B*C = 168 -> padded to 256, 2 grid steps),
    # exact-length concat (96 + 48 + 24 = 168) with the reuse path.
    B, L, C, return_len = 8, 96, 21, 168
    x = jax.random.normal(jax.random.PRNGKey(0), (B, L, C), dtype=jnp.float32)
    out = jax.block_until_ready(multi_scale_data(x, kernel_sizes, return_len))
    ref = _reference_multi_scale_data(x, kernel_sizes, return_len)
    assert out.shape == (B, return_len, C), out.shape
    assert jnp.allclose(out, ref, atol=1e-5, rtol=1e-5), "case3 mismatch vs reference"

    print("KERNEL_OK")
</pallas_src>

<mosaic_0001>
module attributes {stable_mosaic.version = 11 : i64} {
  func.func @_multi_scale_kernel(%arg0: i32, %arg1: memref<16x8xf32, #tpu.memory_space<vmem>>, %arg2: memref<32x8xf32, #tpu.memory_space<vmem>>) attributes {dimension_semantics = [#tpu.dimension_semantics<parallel>], iteration_bounds = array<i64: 1>, scalar_prefetch = 0 : i64, scratch_operands = 0 : i64, tpu.core_type = #tpu.core_type<tc>, window_params = [{transform_indices = @transform_0, window_bounds = array<i64: 16, 8>}, {transform_indices = @transform_1, window_bounds = array<i64: 32, 8>}]} {
    %c0 = arith.constant 0 : index
    %c0_0 = arith.constant 0 : index
    %0 = vector.load %arg1[%c0, %c0_0] : memref<16x8xf32, #tpu.memory_space<vmem>>, vector<16x8xf32>
    %c0_1 = arith.constant 0 : index
    %c0_2 = arith.constant 0 : index
    %1 = vector.load %arg2[%c0_1, %c0_2] : memref<32x8xf32, #tpu.memory_space<vmem>>, vector<16x8xf32>
    tpu.vector_store %arg2[%c0_1, %c0_2], %0 {strides = array<i32>} : memref<32x8xf32, #tpu.memory_space<vmem>>, vector<16x8xf32>,
    %c0_3 = arith.constant 0 : index
    %c0_4 = arith.constant 0 : index
    %2 = tpu.strided_load %arg1[%c0_3, %c0_4] {strides = array<i32: 2, 1>} : memref<16x8xf32, #tpu.memory_space<vmem>>, vector<8x8xf32>
    %c1 = arith.constant 1 : index
    %c0_5 = arith.constant 0 : index
    %3 = tpu.strided_load %arg1[%c1, %c0_5] {strides = array<i32: 2, 1>} : memref<16x8xf32, #tpu.memory_space<vmem>>, vector<8x8xf32>
    %4 = arith.addf %2, %3 : vector<8x8xf32>
    %cst = arith.constant 5.000000e-01 : f32
    %5 = vector.broadcast %cst : f32 to vector<8x8xf32>
    %6 = arith.mulf %4, %5 : vector<8x8xf32>
    %c16 = arith.constant 16 : index
    %c0_6 = arith.constant 0 : index
    %7 = vector.load %arg2[%c16, %c0_6] : memref<32x8xf32, #tpu.memory_space<vmem>>, vector<8x8xf32>
    tpu.vector_store %arg2[%c16, %c0_6], %6 {strides = array<i32>} : memref<32x8xf32, #tpu.memory_space<vmem>>, vector<8x8xf32>,
    %c16_7 = arith.constant 16 : index
    %c0_8 = arith.constant 0 : index
    %8 = tpu.strided_load %arg2[%c16_7, %c0_8] {strides = array<i32: 2, 1>} : memref<32x8xf32, #tpu.memory_space<vmem>>, vector<4x8xf32>
    %c17 = arith.constant 17 : index
    %c0_9 = arith.constant 0 : index
    %9 = tpu.strided_load %arg2[%c17, %c0_9] {strides = array<i32: 2, 1>} : memref<32x8xf32, #tpu.memory_space<vmem>>, vector<4x8xf32>
    %10 = arith.addf %8, %9 : vector<4x8xf32>
    %cst_10 = arith.constant 5.000000e-01 : f32
    %11 = vector.broadcast %cst_10 : f32 to vector<4x8xf32>
    %12 = arith.mulf %10, %11 : vector<4x8xf32>
    %c24 = arith.constant 24 : index
    %c0_11 = arith.constant 0 : index
    %13 = vector.load %arg2[%c24, %c0_11] : memref<32x8xf32, #tpu.memory_space<vmem>>, vector<4x8xf32>
    tpu.vector_store %arg2[%c24, %c0_11], %12 {strides = array<i32>} : memref<32x8xf32, #tpu.memory_space<vmem>>, vector<4x8xf32>,
    %cst_12 = arith.constant 0.000000e+00 : f32
    %14 = vector.broadcast %cst_12 : f32 to vector<4x8xf32>
    %c28 = arith.constant 28 : index
    %c0_13 = arith.constant 0 : index
    %15 = vector.load %arg2[%c28, %c0_13] : memref<32x8xf32, #tpu.memory_space<vmem>>, vector<4x8xf32>
    tpu.vector_store %arg2[%c28, %c0_13], %14 {strides = array<i32>} : memref<32x8xf32, #tpu.memory_space<vmem>>, vector<4x8xf32>,
    return
  }
  func.func @transform_0(%arg0: i32) -> (i32, i32) {
    %c0_i32 = arith.constant 0 : i32
    %c0_i32_0 = arith.constant 0 : i32
    return %c0_i32, %arg0 : i32, i32
  }
  func.func @transform_1(%arg0: i32) -> (i32, i32) {
    %c0_i32 = arith.constant 0 : i32
    %c0_i32_0 = arith.constant 0 : i32
    return %c0_i32, %arg0 : i32, i32
  }
}

</mosaic_0001>

<llo_original>
// kernel: tpu_custom_call.1
$region0: #{tpu_custom_call.1}
  #allocation0 [shape = 'u32[]', space=smem, size = 0x4, offset = 0x4, fixed_abs, tag = 'smem constant byte address 0x4 - core index']
  #allocation1 [shape = 'u32[144,128]{1,0:T(1,128)}', space=vmem, size = 0x12000, scoped, tag = 'internal scratch']
  %s0 = inlined_call_operand.vmem [shape: f32[16,8], index: 0, kind: input, shape index: {}]
  %s1 = inlined_call_operand.vmem [shape: f32[32,8], index: 1, kind: output, shape index: {}]
  %s2 = sld [smem:[#allocation0]]
  $region14: #{tpu_custom_call.1} parent=0
    _
  %s4 = ssub.s32 1, %s2
  %s5 = scalar_select 0, %s4, %s2
  // Predicated region
  $region2: #{tpu_custom_call.1} parent=0 // pred_check
    _
  $region3: #{tpu_custom_call.1} parent=0 // pred_check_branch
    %7 = sbr.rel (0) target = $region5
  $region4: #{tpu_custom_call.1} parent=0 // pred_region
    _
  $region5: #{tpu_custom_call.1} parent=0 // pred_fallthru
    _
  %v8 = vld [vmem:[%s0] sm:$0xff]
  %v9 = vld [vmem:[%s0 + $0x8] sm:$0xff]
  %vm10 = vcmask 64512
  %11 = vst.msk [vmem:[%s1] sm:$0xff] %vm10, %v8
  %12 = vst.msk [vmem:[%s1 + $0x8] sm:$0xff] %vm10, %v9
  %v13 = vld [vmem:[%s0] ss:$2 sm:$0xff]
  %s14 = scalar_lea.vmem %s0, 1
  %v15 = vld [vmem:[%s14] ss:$2 sm:$0xff]
  %v16 = vadd.f32 %v13, %v15
  %v17 = vmul.f32 %v16, 0.5
  %18 = vst.msk [vmem:[%s1 + $0x10] sm:$0xff] %vm10, %v17
  %s19 = scalar_lea.vmem %s1, 16
  %v20 = vld [vmem:[%s19] ss:$2 sm:$0xf]
  %s21 = scalar_lea.vmem %s1, 17
  %v22 = vld [vmem:[%s21] ss:$2 sm:$0xf]
  %v23 = vadd.f32 %v20, %v22
  %v24 = vmul.f32 %v23, 0.5
  %vm25 = vcmask 60416
  %26 = vst.msk [vmem:[%s1 + $0x18] sm:$0xf] %vm25, %v24
  %27 = vst.msk [vmem:[%s1 + $0x1c] sm:$0xf] %vm25, 0.0
  // Predicated region
  $region6: #{tpu_custom_call.1} parent=0 // pred_check
    _
  $region7: #{tpu_custom_call.1} parent=0 // pred_check_branch
    %29 = sbr.rel (0) target = $region9
  $region8: #{tpu_custom_call.1} parent=0 // pred_region
    _
  $region9: #{tpu_custom_call.1} parent=0 // pred_fallthru
    _
  // Predicated region
  $region10: #{tpu_custom_call.1} parent=0 // pred_check
    _
  $region11: #{tpu_custom_call.1} parent=0 // pred_check_branch
    %31 = sbr.rel (0) target = $region13
  $region12: #{tpu_custom_call.1} parent=0 // pred_region
    _
  $region13: #{tpu_custom_call.1} parent=0 // pred_fallthru
    _

</llo_original>
